<compile_context>
chip_gen: v7x
topology: tpu7x:2x2x1
jax: 0.10.0
libtpu: 0.0.40
codegen_flags: <defaults>
</compile_context>

<pallas_src>
import functools

import jax
import jax.numpy as jnp
from jax.experimental import pallas as pl
from jax.experimental.pallas import tpu as pltpu

HID_SIZE = 32


def _round_up(n, m):
    return ((n + m - 1) // m) * m


def net_kernel(xt_ref, w1_ref, b1_ref, w2_ref, b2_ref, o_ref):
    """One batch tile, transposed layout (batch along lanes).

    xt_ref: [obs, Bt]   observations (lane-dense loads)
    w1_ref: [hid, obs]  layer-1 weight (torch [out, in] layout)
    b1_ref: [hid, 1]
    w2_ref: [hid, act]  layer-2 weight ([in, out] layout)
    b2_ref: [act, 1]
    o_ref : [act, Bt]   action probabilities (lane-dense stores)
    """
    xt = xt_ref[...]
    w1 = w1_ref[...]
    b1 = b1_ref[...]
    w2 = w2_ref[...]
    b2 = b2_ref[...]

    obs = xt.shape[0]
    act = w2.shape[1]

    # ---- Layer 1 + ReLU ----------------------------------------------------
    # K = obs is tiny (4 for CartPole): a few VPU broadcast-FMAs instead of
    # pushing a K=4 matmul through the MXU result FIFO.
    acc = w1[:, 0:1] * xt[0:1, :]                         # [hid, Bt]
    for k in range(1, obs):
        acc = acc + w1[:, k:k + 1] * xt[k:k + 1, :]
    h = jnp.maximum(acc + b1, 0.0)                        # [hid, Bt]

    # ---- Layer 2 + Softmax(dim=1) -------------------------------------------
    if act == 2:
        # softmax over 2 classes == sigmoid(logit1 - logit0)
        dw = w2[:, 1:2] - w2[:, 0:1]                      # [hid, 1]
        d = jnp.sum(h * dw, axis=0, keepdims=True)        # [1, Bt]
        d = d + (b2[1:2, :] - b2[0:1, :])
        p1 = 1.0 / (1.0 + jnp.exp(-d))
        o_ref[0:1, :] = 1.0 - p1
        o_ref[1:2, :] = p1
    else:
        # Generic small-action-count path: unrolled over classes, numerically
        # stable softmax, everything stays batch-on-lanes.
        logits = []
        for j in range(act):
            lj = jnp.sum(h * w2[:, j:j + 1], axis=0, keepdims=True)
            logits.append(lj + b2[j:j + 1, :])
        m = logits[0]
        for lj in logits[1:]:
            m = jnp.maximum(m, lj)
        exps = [jnp.exp(lj - m) for lj in logits]
        denom = exps[0]
        for e in exps[1:]:
            denom = denom + e
        inv = 1.0 / denom
        for j in range(act):
            o_ref[j:j + 1, :] = exps[j] * inv


@functools.partial(jax.jit, static_argnames=("block_b",))
def net_forward(x, w1, b1, w2, b2, *, block_b=512):
    """Forward pass.

    x : [B, obs]            (same convention as the PyTorch module)
    w1: [HID, obs], b1: [HID]      (torch nn.Linear layouts)
    w2: [act, HID], b2: [act]
    returns [B, act] softmax probabilities (float32).
    """
    B, obs = x.shape
    hid = w1.shape[0]
    act = w2.shape[0]

    # Batch lives on the lane axis inside the kernel -> tiles are multiples of 128.
    block_b = max(128, _round_up(block_b, 128))
    b_pad = _round_up(max(B, 1), 128)
    b_tile = min(block_b, b_pad)
    b_pad = _round_up(b_pad, b_tile)

    x = x.astype(jnp.float32)
    if b_pad != B:
        x = jnp.pad(x, ((0, b_pad - B), (0, 0)))
    xt = x.T                                              # [obs, b_pad], lane-dense

    w1k = w1.astype(jnp.float32)                          # [hid, obs]
    b1k = b1.astype(jnp.float32).reshape(hid, 1)
    w2k = w2.astype(jnp.float32).T                        # [hid, act]
    b2k = b2.astype(jnp.float32).reshape(act, 1)

    grid = (b_pad // b_tile,)
    out_t = pl.pallas_call(
        net_kernel,
        out_shape=jax.ShapeDtypeStruct((act, b_pad), jnp.float32),
        grid=grid,
        in_specs=[
            pl.BlockSpec((obs, b_tile), lambda i: (0, i)),   # streamed activations
            pl.BlockSpec((hid, obs), lambda i: (0, 0)),      # weights: constant block
            pl.BlockSpec((hid, 1), lambda i: (0, 0)),        #   -> DMA'd once, stay
            pl.BlockSpec((hid, act), lambda i: (0, 0)),      #      VMEM-resident
            pl.BlockSpec((act, 1), lambda i: (0, 0)),
        ],
        out_specs=pl.BlockSpec((act, b_tile), lambda i: (0, i)),
        compiler_params=pltpu.CompilerParams(
            dimension_semantics=("parallel",),   # split batch tiles across TCs (v7x)
            vmem_limit_bytes=32 * 1024 * 1024,   # explicit cap, safe for v7x's 64 MiB
        ),
    )(xt, w1k, b1k, w2k, b2k)

    return out_t.T[:B]                                    # back to [B, act]


if __name__ == "__main__":
    obs_size, action_size = 4, 2

    key = jax.random.PRNGKey(0)
    k1, k2, k3, k4, k5, k6 = jax.random.split(key, 6)

    # PyTorch-style uniform(-1/sqrt(fan_in), +) init, torch nn.Linear layouts.
    bound1 = 1.0 / (obs_size ** 0.5)
    bound2 = 1.0 / (HID_SIZE ** 0.5)
    w1 = jax.random.uniform(k1, (HID_SIZE, obs_size), jnp.float32, -bound1, bound1)
    b1 = jax.random.uniform(k2, (HID_SIZE,), jnp.float32, -bound1, bound1)
    w2 = jax.random.uniform(k3, (action_size, HID_SIZE), jnp.float32, -bound2, bound2)
    b2 = jax.random.uniform(k4, (action_size,), jnp.float32, -bound2, bound2)

    def ref_forward(xv):
        h = jnp.maximum(xv @ w1.T + b1, 0.0)
        return jax.nn.softmax(h @ w2.T + b2, axis=1)

    # Small batch (typical single-policy rollout), single-tile grid.
    x_small = jax.random.normal(k5, (8, obs_size), jnp.float32)
    out_small = jax.block_until_ready(net_forward(x_small, w1, b1, w2, b2))
    assert out_small.shape == (8, action_size)
    assert jnp.allclose(out_small, ref_forward(x_small), atol=1e-5), "small-batch mismatch"
    assert jnp.allclose(jnp.sum(out_small, axis=1), 1.0, atol=1e-5)

    # ES-population sized batch: exercises batch padding + multi-tile grid (grid=(3,)).
    x_pop = jax.random.normal(k6, (640, obs_size), jnp.float32)
    out_pop = jax.block_until_ready(net_forward(x_pop, w1, b1, w2, b2, block_b=256))
    assert out_pop.shape == (640, action_size)
    assert jnp.allclose(out_pop, ref_forward(x_pop), atol=1e-5), "population-batch mismatch"

    print("KERNEL_OK")
</pallas_src>

<mosaic_0001>
module attributes {stable_mosaic.version = 11 : i64} {
  func.func @net_kernel(%arg0: i32, %arg1: memref<4x128xf32, #tpu.memory_space<vmem>>, %arg2: memref<32x4xf32, #tpu.memory_space<vmem>>, %arg3: memref<32x1xf32, #tpu.memory_space<vmem>>, %arg4: memref<32x2xf32, #tpu.memory_space<vmem>>, %arg5: memref<2x1xf32, #tpu.memory_space<vmem>>, %arg6: memref<2x128xf32, #tpu.memory_space<vmem>>) attributes {dimension_semantics = [#tpu.dimension_semantics<parallel>], iteration_bounds = array<i64: 1>, scalar_prefetch = 0 : i64, scratch_operands = 0 : i64, tpu.core_type = #tpu.core_type<tc>, window_params = [{transform_indices = @transform_0, window_bounds = array<i64: 4, 128>}, {pipeline_mode = #tpu.pipeline_mode<synchronous>, transform_indices = @transform_1, window_bounds = array<i64: 32, 4>}, {pipeline_mode = #tpu.pipeline_mode<synchronous>, transform_indices = @transform_2, window_bounds = array<i64: 32, 1>}, {pipeline_mode = #tpu.pipeline_mode<synchronous>, transform_indices = @transform_3, window_bounds = array<i64: 32, 2>}, {pipeline_mode = #tpu.pipeline_mode<synchronous>, transform_indices = @transform_4, window_bounds = array<i64: 2, 1>}, {transform_indices = @transform_5, window_bounds = array<i64: 2, 128>}]} {
    %c0 = arith.constant 0 : index
    %c0_0 = arith.constant 0 : index
    %0 = vector.load %arg1[%c0, %c0_0] : memref<4x128xf32, #tpu.memory_space<vmem>>, vector<4x128xf32>
    %c0_1 = arith.constant 0 : index
    %c0_2 = arith.constant 0 : index
    %1 = vector.load %arg2[%c0_1, %c0_2] : memref<32x4xf32, #tpu.memory_space<vmem>>, vector<32x4xf32>
    %c0_3 = arith.constant 0 : index
    %c0_4 = arith.constant 0 : index
    %2 = vector.load %arg3[%c0_3, %c0_4] : memref<32x1xf32, #tpu.memory_space<vmem>>, vector<32x1xf32>
    %c0_5 = arith.constant 0 : index
    %c0_6 = arith.constant 0 : index
    %3 = vector.load %arg4[%c0_5, %c0_6] : memref<32x2xf32, #tpu.memory_space<vmem>>, vector<32x2xf32>
    %c0_7 = arith.constant 0 : index
    %c0_8 = arith.constant 0 : index
    %4 = vector.load %arg5[%c0_7, %c0_8] : memref<2x1xf32, #tpu.memory_space<vmem>>, vector<2x1xf32>
    %5 = vector.extract_strided_slice %1 {offsets = [0, 0], sizes = [32, 1], strides = [1, 1]} : vector<32x4xf32> to vector<32x1xf32>
    %6 = vector.extract_strided_slice %0 {offsets = [0, 0], sizes = [1, 128], strides = [1, 1]} : vector<4x128xf32> to vector<1x128xf32>
    %7 = vector.broadcast %5 : vector<32x1xf32> to vector<32x128xf32>
    %8 = vector.broadcast %6 : vector<1x128xf32> to vector<32x128xf32>
    %9 = arith.mulf %7, %8 : vector<32x128xf32>
    %10 = vector.extract_strided_slice %1 {offsets = [0, 1], sizes = [32, 1], strides = [1, 1]} : vector<32x4xf32> to vector<32x1xf32>
    %11 = vector.extract_strided_slice %0 {offsets = [1, 0], sizes = [1, 128], strides = [1, 1]} : vector<4x128xf32> to vector<1x128xf32>
    %12 = vector.broadcast %10 : vector<32x1xf32> to vector<32x128xf32>
    %13 = vector.broadcast %11 : vector<1x128xf32> to vector<32x128xf32>
    %14 = arith.mulf %12, %13 : vector<32x128xf32>
    %15 = arith.addf %9, %14 : vector<32x128xf32>
    %16 = vector.extract_strided_slice %1 {offsets = [0, 2], sizes = [32, 1], strides = [1, 1]} : vector<32x4xf32> to vector<32x1xf32>
    %17 = vector.extract_strided_slice %0 {offsets = [2, 0], sizes = [1, 128], strides = [1, 1]} : vector<4x128xf32> to vector<1x128xf32>
    %18 = vector.broadcast %16 : vector<32x1xf32> to vector<32x128xf32>
    %19 = vector.broadcast %17 : vector<1x128xf32> to vector<32x128xf32>
    %20 = arith.mulf %18, %19 : vector<32x128xf32>
    %21 = arith.addf %15, %20 : vector<32x128xf32>
    %22 = vector.extract_strided_slice %1 {offsets = [0, 3], sizes = [32, 1], strides = [1, 1]} : vector<32x4xf32> to vector<32x1xf32>
    %23 = vector.extract_strided_slice %0 {offsets = [3, 0], sizes = [1, 128], strides = [1, 1]} : vector<4x128xf32> to vector<1x128xf32>
    %24 = vector.broadcast %22 : vector<32x1xf32> to vector<32x128xf32>
    %25 = vector.broadcast %23 : vector<1x128xf32> to vector<32x128xf32>
    %26 = arith.mulf %24, %25 : vector<32x128xf32>
    %27 = arith.addf %21, %26 : vector<32x128xf32>
    %28 = vector.broadcast %2 : vector<32x1xf32> to vector<32x128xf32>
    %29 = arith.addf %27, %28 : vector<32x128xf32>
    %cst = arith.constant 0.000000e+00 : f32
    %30 = vector.broadcast %cst : f32 to vector<32x128xf32>
    %31 = arith.maximumf %29, %30 : vector<32x128xf32>
    %32 = vector.extract_strided_slice %3 {offsets = [0, 1], sizes = [32, 1], strides = [1, 1]} : vector<32x2xf32> to vector<32x1xf32>
    %33 = vector.extract_strided_slice %3 {offsets = [0, 0], sizes = [32, 1], strides = [1, 1]} : vector<32x2xf32> to vector<32x1xf32>
    %34 = arith.subf %32, %33 : vector<32x1xf32>
    %35 = vector.broadcast %34 : vector<32x1xf32> to vector<32x128xf32>
    %36 = arith.mulf %31, %35 : vector<32x128xf32>
    %cst_9 = arith.constant dense<0.000000e+00> : vector<128xf32>
    %37 = vector.multi_reduction <add>, %36, %cst_9 [0] : vector<32x128xf32> to vector<128xf32>
    %38 = vector.shape_cast %37 : vector<128xf32> to vector<1x128xf32>
    %39 = vector.extract_strided_slice %4 {offsets = [1, 0], sizes = [1, 1], strides = [1, 1]} : vector<2x1xf32> to vector<1x1xf32>
    %40 = vector.extract_strided_slice %4 {offsets = [0, 0], sizes = [1, 1], strides = [1, 1]} : vector<2x1xf32> to vector<1x1xf32>
    %41 = arith.subf %39, %40 : vector<1x1xf32>
    %42 = vector.broadcast %41 : vector<1x1xf32> to vector<1x128xf32>
    %43 = arith.addf %38, %42 : vector<1x128xf32>
    %cst_10 = arith.constant 0.000000e+00 : f32
    %44 = vector.broadcast %cst_10 : f32 to vector<1x128xf32>
    %45 = arith.subf %44, %43 : vector<1x128xf32>
    %46 = math.exp %45 : vector<1x128xf32>
    %cst_11 = arith.constant 1.000000e+00 : f32
    %47 = vector.broadcast %cst_11 : f32 to vector<1x128xf32>
    %48 = arith.addf %47, %46 : vector<1x128xf32>
    %cst_12 = arith.constant 1.000000e+00 : f32
    %49 = vector.broadcast %cst_12 : f32 to vector<1x128xf32>
    %50 = arith.divf %49, %48 : vector<1x128xf32>
    %cst_13 = arith.constant 1.000000e+00 : f32
    %51 = vector.broadcast %cst_13 : f32 to vector<1x128xf32>
    %52 = arith.subf %51, %50 : vector<1x128xf32>
    %c0_14 = arith.constant 0 : index
    %c0_15 = arith.constant 0 : index
    %53 = vector.load %arg6[%c0_14, %c0_15] : memref<2x128xf32, #tpu.memory_space<vmem>>, vector<1x128xf32>
    tpu.vector_store %arg6[%c0_14, %c0_15], %52 {strides = array<i32>} : memref<2x128xf32, #tpu.memory_space<vmem>>, vector<1x128xf32>,
    %c1 = arith.constant 1 : index
    %c0_16 = arith.constant 0 : index
    %54 = vector.load %arg6[%c1, %c0_16] : memref<2x128xf32, #tpu.memory_space<vmem>>, vector<1x128xf32>
    tpu.vector_store %arg6[%c1, %c0_16], %50 {strides = array<i32>} : memref<2x128xf32, #tpu.memory_space<vmem>>, vector<1x128xf32>,
    return
  }
  func.func @transform_0(%arg0: i32) -> (i32, i32) {
    %c0_i32 = arith.constant 0 : i32
    %c0_i32_0 = arith.constant 0 : i32
    return %c0_i32, %arg0 : i32, i32
  }
  func.func @transform_1(%arg0: i32) -> (i32, i32) {
    %c0_i32 = arith.constant 0 : i32
    %c0_i32_0 = arith.constant 0 : i32
    %c0_i32_1 = arith.constant 0 : i32
    return %c0_i32, %c0_i32_0 : i32, i32
  }
  func.func @transform_2(%arg0: i32) -> (i32, i32) {
    %c0_i32 = arith.constant 0 : i32
    %c0_i32_0 = arith.constant 0 : i32
    %c0_i32_1 = arith.constant 0 : i32
    return %c0_i32, %c0_i32_0 : i32, i32
  }
  func.func @transform_3(%arg0: i32) -> (i32, i32) {
    %c0_i32 = arith.constant 0 : i32
    %c0_i32_0 = arith.constant 0 : i32
    %c0_i32_1 = arith.constant 0 : i32
    return %c0_i32, %c0_i32_0 : i32, i32
  }
  func.func @transform_4(%arg0: i32) -> (i32, i32) {
    %c0_i32 = arith.constant 0 : i32
    %c0_i32_0 = arith.constant 0 : i32
    %c0_i32_1 = arith.constant 0 : i32
    return %c0_i32, %c0_i32_0 : i32, i32
  }
  func.func @transform_5(%arg0: i32) -> (i32, i32) {
    %c0_i32 = arith.constant 0 : i32
    %c0_i32_0 = arith.constant 0 : i32
    return %c0_i32, %arg0 : i32, i32
  }
}

</mosaic_0001>

<llo_original>
// kernel: net_forward.1
$region0: #{net_forward.1}
  #allocation0 [shape = 'u32[]', space=smem, size = 0x4, offset = 0x4, fixed_abs, tag = 'smem constant byte address 0x4 - core index']
  #allocation1 [shape = 'u32[144,128]{1,0:T(1,128)}', space=vmem, size = 0x12000, scoped, tag = 'internal scratch']
  %s0 = inlined_call_operand.vmem [shape: f32[4,128], index: 0, kind: input, shape index: {}]
  %s1 = inlined_call_operand.vmem [shape: f32[32,4], index: 1, kind: input, shape index: {}]
  %s2 = inlined_call_operand.vmem [shape: f32[32,1], index: 2, kind: input, shape index: {}]
  %s3 = inlined_call_operand.vmem [shape: f32[32,2], index: 3, kind: input, shape index: {}]
  %s4 = inlined_call_operand.vmem [shape: f32[2,1], index: 4, kind: input, shape index: {}]
  %s5 = inlined_call_operand.hbm [shape: f32[2,128], index: 5, kind: output, shape index: {}]
  %s6 = sld [smem:[#allocation0]]
  $region30: #{net_forward.1} parent=0
    _
  %s8 = ssub.s32 1, %s6
  %s9 = scalar_select 0, %s8, %s6
  $region1: #{net_forward.1} parent=0
    #allocation2 [shape = 'u8[1024]{0}', space=vmem, size = 0x400, scoped, tag = 'output window, operand 0, single buffered']
    #allocation3 [shape = 's32[1]{0}', space=sflag, size = 0x4, scoped, tag = 'scoped memory for net_forward.1']
    %10 = vsyncpa [#allocation3], 0
    // Predicated region
    $region2: #{net_forward.1} parent=1 // pred_check
      _
    $region3: #{net_forward.1} parent=1 // pred_check_branch
      %12 = sbr.rel (0) target = $region5
    $region4: #{net_forward.1} parent=1 // pred_region
      _
    $region5: #{net_forward.1} parent=1 // pred_fallthru
      _
    // Predicated region
    $region6: #{net_forward.1} parent=1 // pred_check
      _
    $region7: #{net_forward.1} parent=1 // pred_check_branch
      %14 = sbr.rel (0) target = $region9
    $region8: #{net_forward.1} parent=1 // pred_region
      _
    $region9: #{net_forward.1} parent=1 // pred_fallthru
      _
    // Predicated region
    $region10: #{net_forward.1} parent=1 // pred_check
      _
    $region11: #{net_forward.1} parent=1 // pred_check_branch
      %16 = sbr.rel (0) target = $region13
    $region12: #{net_forward.1} parent=1 // pred_region
      _
    $region13: #{net_forward.1} parent=1 // pred_fallthru
      _
    // Predicated region
    $region14: #{net_forward.1} parent=1 // pred_check
      _
    $region15: #{net_forward.1} parent=1 // pred_check_branch
      %18 = sbr.rel (0) target = $region17
    $region16: #{net_forward.1} parent=1 // pred_region
      _
    $region17: #{net_forward.1} parent=1 // pred_fallthru
      _
    // Predicated region
    $region18: #{net_forward.1} parent=1 // pred_check
      _
    $region19: #{net_forward.1} parent=1 // pred_check_branch
      %20 = sbr.rel (0) target = $region21
    $region20: #{net_forward.1} parent=1 // pred_region
      _
    $region21: #{net_forward.1} parent=1 // pred_fallthru
      _
    %v21 = vld [vmem:[%s0] sm:$0xf]
    %v22 = vld [vmem:[%s1] sm:$0xff]
    %v23 = vld [vmem:[%s1 + $0x8] sm:$0xff]
    %v24 = vld [vmem:[%s1 + $0x10] sm:$0xff]
    %v25 = vld [vmem:[%s1 + $0x18] sm:$0xff]
    %v26 = vld [vmem:[%s2] sm:$0xff]
    %v27 = vld [vmem:[%s2 + $0x8] sm:$0xff]
    %v28 = vld [vmem:[%s2 + $0x10] sm:$0xff]
    %v29 = vld [vmem:[%s2 + $0x18] sm:$0xff]
    %v30 = vld [vmem:[%s3] sm:$0xff]
    %v31 = vld [vmem:[%s3 + $0x8] sm:$0xff]
    %v32 = vld [vmem:[%s3 + $0x10] sm:$0xff]
    %v33 = vld [vmem:[%s3 + $0x18] sm:$0xff]
    %v34 = vld [vmem:[%s4] sm:$0x3]
    %36 = vset.pattern.permute.xlu0 0
    %37 = vperm.xlu0 %36, %v22
    %v38 = vpop.permute.xlu0 %37
    %41 = vset.pattern.permute.xlu0 0
    %42 = vperm.xlu0 %41, %v23
    %v43 = vpop.permute.xlu0 %42
    %46 = vset.pattern.permute.xlu0 0
    %47 = vperm.xlu0 %46, %v24
    %v48 = vpop.permute.xlu0 %47
    %51 = vset.pattern.permute.xlu0 0
    %52 = vperm.xlu0 %51, %v25
    %v53 = vpop.permute.xlu0 %52
    %v55 = vlaneseq
    %v56 = vshrl.u32 %v55, 7
    %v57 = vsub.s32 0, %v56
    %v58 = vrot.slane %v21, %v57
    %v59 = vmul.f32 %v38, %v58
    %v60 = vmul.f32 %v43, %v58
    %v61 = vmul.f32 %v48, %v58
    %v62 = vmul.f32 %v53, %v58
    %63 = vset.pattern.permute.xlu0 1
    %64 = vperm.xlu0 %63, %v22
    %v65 = vpop.permute.xlu0 %64
    %67 = vset.pattern.permute.xlu0 1
    %68 = vperm.xlu0 %67, %v23
    %v69 = vpop.permute.xlu0 %68
    %71 = vset.pattern.permute.xlu0 1
    %72 = vperm.xlu0 %71, %v24
    %v73 = vpop.permute.xlu0 %72
    %75 = vset.pattern.permute.xlu0 1
    %76 = vperm.xlu0 %75, %v25
    %v77 = vpop.permute.xlu0 %76
    %v79 = vlaneseq
    %v80 = vshrl.u32 %v79, 7
    %v81 = vsub.s32 1, %v80
    %v82 = vrot.slane %v21, %v81
    %v83 = vmul.f32 %v65, %v82
    %v84 = vmul.f32 %v69, %v82
    %v85 = vmul.f32 %v73, %v82
    %v86 = vmul.f32 %v77, %v82
    %v87 = vadd.f32 %v59, %v83
    %v88 = vadd.f32 %v60, %v84
    %v89 = vadd.f32 %v61, %v85
    %v90 = vadd.f32 %v62, %v86
    %91 = vset.pattern.permute.xlu0 2
    %92 = vperm.xlu0 %91, %v22
    %v93 = vpop.permute.xlu0 %92
    %95 = vset.pattern.permute.xlu0 2
    %96 = vperm.xlu0 %95, %v23
    %v97 = vpop.permute.xlu0 %96
    %99 = vset.pattern.permute.xlu0 2
    %100 = vperm.xlu0 %99, %v24
    %v101 = vpop.permute.xlu0 %100
    %103 = vset.pattern.permute.xlu0 2
    %104 = vperm.xlu0 %103, %v25
    %v105 = vpop.permute.xlu0 %104
    %v107 = vlaneseq
    %v108 = vshrl.u32 %v107, 7
    %v109 = vsub.s32 2, %v108
    %v110 = vrot.slane %v21, %v109
    %v111 = vmul.f32 %v93, %v110
    %v112 = vmul.f32 %v97, %v110
    %v113 = vmul.f32 %v101, %v110
    %v114 = vmul.f32 %v105, %v110
    %v115 = vadd.f32 %v87, %v111
    %v116 = vadd.f32 %v88, %v112
    %v117 = vadd.f32 %v89, %v113
    %v118 = vadd.f32 %v90, %v114
    %119 = vset.pattern.permute.xlu0 3
    %120 = vperm.xlu0 %119, %v22
    %v121 = vpop.permute.xlu0 %120
    %123 = vset.pattern.permute.xlu0 3
    %124 = vperm.xlu0 %123, %v23
    %v125 = vpop.permute.xlu0 %124
    %127 = vset.pattern.permute.xlu0 3
    %128 = vperm.xlu0 %127, %v24
    %v129 = vpop.permute.xlu0 %128
    %131 = vset.pattern.permute.xlu0 3
    %132 = vperm.xlu0 %131, %v25
    %v133 = vpop.permute.xlu0 %132
    %v135 = vlaneseq
    %v136 = vshrl.u32 %v135, 7
    %v137 = vsub.s32 3, %v136
    %v138 = vrot.slane %v21, %v137
    %v139 = vmul.f32 %v121, %v138
    %v140 = vmul.f32 %v125, %v138
    %v141 = vmul.f32 %v129, %v138
    %v142 = vmul.f32 %v133, %v138
    %v143 = vadd.f32 %v115, %v139
    %v144 = vadd.f32 %v116, %v140
    %v145 = vadd.f32 %v117, %v141
    %v146 = vadd.f32 %v118, %v142
    %148 = vset.pattern.permute.xlu0 0
    %149 = vperm.xlu0 %148, %v26
    %v150 = vpop.permute.xlu0 %149
    %153 = vset.pattern.permute.xlu0 0
    %154 = vperm.xlu0 %153, %v27
    %v155 = vpop.permute.xlu0 %154
    %158 = vset.pattern.permute.xlu0 0
    %159 = vperm.xlu0 %158, %v28
    %v160 = vpop.permute.xlu0 %159
    %163 = vset.pattern.permute.xlu0 0
    %164 = vperm.xlu0 %163, %v29
    %v165 = vpop.permute.xlu0 %164
    %v167 = vadd.f32 %v143, %v150
    %v168 = vadd.f32 %v144, %v155
    %v169 = vadd.f32 %v145, %v160
    %v170 = vadd.f32 %v146, %v165
    %v171 = vmax.f32 %v167, 0.0
    %v172 = vmax.f32 %v168, 0.0
    %v173 = vmax.f32 %v169, 0.0
    %v174 = vmax.f32 %v170, 0.0
    %179 = vrot.lane.b32.xlu0 %v30, 1
    %v180 = vpop.permute.xlu0 %179
    %181 = vrot.lane.b32.xlu0 %v31, 1
    %v182 = vpop.permute.xlu0 %181
    %183 = vrot.lane.b32.xlu0 %v32, 1
    %v184 = vpop.permute.xlu0 %183
    %185 = vrot.lane.b32.xlu0 %v33, 1
    %v186 = vpop.permute.xlu0 %185
    %v191 = vsub.f32 %v30, %v180
    %v192 = vsub.f32 %v31, %v182
    %v193 = vsub.f32 %v32, %v184
    %v194 = vsub.f32 %v33, %v186
    %196 = vset.pattern.permute.xlu0 1
    %197 = vperm.xlu0 %196, %v191
    %v198 = vpop.permute.xlu0 %197
    %201 = vset.pattern.permute.xlu0 1
    %202 = vperm.xlu0 %201, %v192
    %v203 = vpop.permute.xlu0 %202
    %206 = vset.pattern.permute.xlu0 1
    %207 = vperm.xlu0 %206, %v193
    %v208 = vpop.permute.xlu0 %207
    %211 = vset.pattern.permute.xlu0 1
    %212 = vperm.xlu0 %211, %v194
    %v213 = vpop.permute.xlu0 %212
    %v215 = vmul.f32 %v171, %v198
    %v216 = vmul.f32 %v172, %v203
    %v217 = vmul.f32 %v173, %v208
    %v218 = vmul.f32 %v174, %v213
    %v219 = vadd.f32 %v215, %v216
    %v220 = vadd.f32 %v219, %v217
    %v221 = vadd.f32 %v220, %v218
    %v222 = vrot.slane %v221, 4
    %v223 = vadd.f32 %v221, %v222
    %v224 = vrot.slane %v223, 2
    %v225 = vadd.f32 %v223, %v224
    %v226 = vrot.slane %v225, 1
    %v227 = vadd.f32 %v225, %v226
    %v229 = vrot.slane %v34, 7
    %v231 = vsub.f32 %v34, %v229
    %233 = vset.pattern.permute.xlu0 0
    %234 = vperm.xlu0 %233, %v231
    %v235 = vpop.permute.xlu0 %234
    %v237 = vadd.f32 %v227, %v235
    %v238 = vsub.f32 0.0, %v237
    %v239 = vmul.f32 %v238, 1.442695
    %v240 = vpow.pop %v239
    %v241 = vadd.f32 %v240, 1.0
    %v242 = vrcp.pop %v241
    %v243 = vmul.f32 1.0, %v242
    %v244 = vsub.f32 1.0, %v243
    %245 = vst [vmem:[#allocation2 - $0x1] sm:$0x2] %v244
    %246 = vst [vmem:[#allocation2] sm:$0x2] %v243
    // Predicated region
    $region22: #{net_forward.1} parent=1 // pred_check
      _
    $region23: #{net_forward.1} parent=1 // pred_check_branch
      %248 = sbr.rel (0) target = $region25
    $region24: #{net_forward.1} parent=1 // pred_region
      %s250 = ssub.s32 32, 32
      %251 = vsyncadd [#allocation3], %s250
      %s253 = sshll.u32 [#allocation2], 4
      %s254 = int_to_ptr.vmem [resolvable:$true] %s253
      %256 = dma.vmem_to_hbm [thread:$0]  %s254, 32, %s5, [#allocation3]
    $region25: #{net_forward.1} parent=1 // pred_fallthru
      _
    // Predicated region
    $region26: #{net_forward.1} parent=1 // pred_check
      _
    $region27: #{net_forward.1} parent=1 // pred_check_branch
      %258 = sbr.rel (0) target = $region29
    $region28: #{net_forward.1} parent=1 // pred_region
      %259 = dma.done [#allocation3], 32
    $region29: #{net_forward.1} parent=1 // pred_fallthru
      _
    %260 = vsyncpa [#allocation3], 1

</llo_original>
